<compile_context>
chip_gen: v6e
topology: v6e:2x2x1
jax: 0.10.0
libtpu: 0.0.40
codegen_flags: <defaults>
</compile_context>

<pallas_src>
import jax
import jax.numpy as jnp
from jax import lax
from jax.experimental import pallas as pl
from jax.experimental.pallas import tpu as pltpu

EPS = 1e-5


def _prenorm_kernel(x_ref, gamma_ref, beta_ref, w_ref, b_ref, o_ref):
    # x_ref:     (tm, D_in)    tile of tokens (rows)
    # gamma_ref: (1, D_in)     LayerNorm scale
    # beta_ref:  (1, D_in)     LayerNorm shift
    # w_ref:     (tn, D_in)    Linear weight tile, PyTorch (out, in) layout
    # b_ref:     (1, tn)       Linear bias tile
    # o_ref:     (tm, tn)
    x = x_ref[...].astype(jnp.float32)

    # LayerNorm over the feature axis, one reduction pass:
    #   var = E[x^2] - E[x]^2   (biased, matches PyTorch LayerNorm)
    m = jnp.mean(x, axis=-1, keepdims=True)
    m2 = jnp.mean(x * x, axis=-1, keepdims=True)
    var = jnp.maximum(m2 - m * m, 0.0)
    inv = lax.rsqrt(var + EPS)
    y = (x - m) * inv * gamma_ref[...].astype(jnp.float32) \
        + beta_ref[...].astype(jnp.float32)

    # Feed the MXU at the input precision (bf16 in real deployments); keep the
    # f32 accumulator via preferred_element_type.
    y = y.astype(x_ref.dtype)
    w = w_ref[...].astype(y.dtype)

    # Contract y's feature axis with the weight's "in" axis (no transpose
    # materialized anywhere): (tm, D_in) x (tn, D_in) -> (tm, tn).
    out = lax.dot_general(
        y, w,
        dimension_numbers=(((1,), (1,)), ((), ())),
        preferred_element_type=jnp.float32,
    )
    out = out + b_ref[...].astype(jnp.float32)
    o_ref[...] = out.astype(o_ref.dtype)


def prenorm_forward(x, gamma, beta, weight, bias, *, tile_rows=256, tile_cols=512):
    """PreNorm(LayerNorm, Linear) forward.

    x:      (B, S, D_in)
    gamma:  (D_in,)   beta: (D_in,)        LayerNorm affine params
    weight: (D_out, D_in)  bias: (D_out,)  Linear params (PyTorch layout)
    returns (B, S, D_out)
    """
    B, S, D = x.shape
    D_out, D_in = weight.shape
    assert D_in == D, "Linear in_features must match LayerNorm dim"

    N = B * S
    x2 = x.reshape(N, D)

    # Row tile: multiple of 8 sublanes, never larger than the padded row
    # count. Sweep 256/512/1024 for large workloads.
    tm = int(min(int(tile_rows), pl.cdiv(N, 8) * 8))
    tm = max(8, (tm // 8) * 8)
    grid_m = pl.cdiv(N, tm)
    n_pad = grid_m * tm
    if n_pad != N:
        # Zero-pad tail rows; they produce finite junk that is sliced off.
        x2 = jnp.pad(x2, ((0, n_pad - N), (0, 0)))

    # Output-feature tile: single resident tile when D_out is small, otherwise
    # 128-aligned column tiles (lane-dense stores) so the weight tile stays
    # bounded in VMEM for large D_out.
    if D_out <= max(int(tile_cols), 128):
        tn = D_out
        grid_n = 1
        dout_pad = D_out
        weight_p = weight
        bias_p = bias.reshape(1, D_out)
    else:
        tn = max(128, (int(tile_cols) // 128) * 128)
        grid_n = pl.cdiv(D_out, tn)
        dout_pad = grid_n * tn
        if dout_pad != D_out:
            weight_p = jnp.pad(weight, ((0, dout_pad - D_out), (0, 0)))
            bias_p = jnp.pad(bias, (0, dout_pad - D_out)).reshape(1, dout_pad)
        else:
            weight_p = weight
            bias_p = bias.reshape(1, dout_pad)

    gamma2 = gamma.reshape(1, D)
    beta2 = beta.reshape(1, D)

    itemsize = x.dtype.itemsize
    w_itemsize = weight.dtype.itemsize
    vmem_est = (2 * tm * D * itemsize           # x tile (double-buffered)
                + 2 * tm * tn * itemsize        # out tile (double-buffered)
                + 2 * tn * D * w_itemsize       # weight tile (double-buffered)
                + 2 * (2 * D + tn) * 4          # gamma / beta / bias
                + 4 * tm * max(D, tn) * 4)      # f32 temporaries headroom
    vmem_limit = min(max(32 * 1024 * 1024, int(vmem_est * 3 // 2)),
                     64 * 1024 * 1024)          # safe on v5e/v6e/v7x

    out2 = pl.pallas_call(
        _prenorm_kernel,
        out_shape=jax.ShapeDtypeStruct((n_pad, dout_pad), x.dtype),
        grid_spec=pltpu.PrefetchScalarGridSpec(
            num_scalar_prefetch=0,
            grid=(grid_m, grid_n),
            in_specs=[
                pl.BlockSpec((tm, D), lambda i, j: (i, 0)),     # x rows
                pl.BlockSpec((1, D), lambda i, j: (0, 0)),      # gamma (resident)
                pl.BlockSpec((1, D), lambda i, j: (0, 0)),      # beta  (resident)
                pl.BlockSpec((tn, D), lambda i, j: (j, 0)),     # weight column tile
                pl.BlockSpec((1, tn), lambda i, j: (0, j)),     # bias column tile
            ],
            out_specs=pl.BlockSpec((tm, tn), lambda i, j: (i, j)),
        ),
        compiler_params=pltpu.CompilerParams(
            # Both axes are independent (LayerNorm recomputed per column tile,
            # no cross-iteration state) -> megacore can shard either axis.
            dimension_semantics=("parallel", "parallel"),
            vmem_limit_bytes=vmem_limit,
        ),
    )(x2, gamma2, beta2, weight_p, bias_p)

    return out2[:N, :D_out].reshape(B, S, D_out)


def _reference(x, gamma, beta, weight, bias):
    # Plain-JAX reference (same math as PyTorch LayerNorm + Linear).
    mean = jnp.mean(x, axis=-1, keepdims=True)
    var = jnp.mean((x - mean) ** 2, axis=-1, keepdims=True)
    xn = (x - mean) / jnp.sqrt(var + EPS) * gamma + beta
    return xn @ weight.T + bias


if __name__ == "__main__":
    # Small shapes consistent with a PreNorm transformer block.
    # S=13 makes N=26 rows, NOT a multiple of the 8-row demo tile,
    # so the row tail-padding path is exercised too.
    B, S, D = 2, 13, 128

    key = jax.random.PRNGKey(0)
    kx, kg, kbt, kw, kb, kw2, kb2 = jax.random.split(key, 7)

    x = jax.random.normal(kx, (B, S, D), dtype=jnp.float32)

    # LayerNorm params (non-trivial affine so the check is meaningful).
    gamma = 1.0 + 0.1 * jax.random.normal(kg, (D,), dtype=jnp.float32)
    beta = 0.05 * jax.random.normal(kbt, (D,), dtype=jnp.float32)

    # --- Test 1: square Linear(dim, dim), single resident weight tile. -----
    weight = jax.random.normal(kw, (D, D), dtype=jnp.float32) * 0.02
    bias = jax.random.normal(kb, (D,), dtype=jnp.float32) * 0.01

    out = prenorm_forward(x, gamma, beta, weight, bias, tile_rows=8)
    jax.block_until_ready(out)
    ref = _reference(x, gamma, beta, weight, bias)
    assert jnp.allclose(out, ref, atol=1e-4, rtol=1e-4), "mismatch (square)"

    # --- Test 2: rectangular Linear with column tiling + D_out padding. ----
    D_out2 = 320  # not a multiple of the 128-wide column tile -> padding path
    weight2 = jax.random.normal(kw2, (D_out2, D), dtype=jnp.float32) * 0.02
    bias2 = jax.random.normal(kb2, (D_out2,), dtype=jnp.float32) * 0.01

    out2 = prenorm_forward(x, gamma, beta, weight2, bias2,
                           tile_rows=16, tile_cols=128)
    jax.block_until_ready(out2)
    ref2 = _reference(x, gamma, beta, weight2, bias2)
    assert jnp.allclose(out2, ref2, atol=1e-4, rtol=1e-4), "mismatch (tiled)"

    print("KERNEL_OK")
</pallas_src>

<mosaic_0001>
module attributes {stable_mosaic.version = 11 : i64} {
  func.func @_prenorm_kernel(%arg0: i32, %arg1: i32, %arg2: memref<8x128xf32, #tpu.memory_space<vmem>>, %arg3: memref<1x128xf32, #tpu.memory_space<vmem>>, %arg4: memref<1x128xf32, #tpu.memory_space<vmem>>, %arg5: memref<128x128xf32, #tpu.memory_space<vmem>>, %arg6: memref<1x128xf32, #tpu.memory_space<vmem>>, %arg7: memref<8x128xf32, #tpu.memory_space<vmem>>) attributes {dimension_semantics = [#tpu.dimension_semantics<parallel>, #tpu.dimension_semantics<parallel>], iteration_bounds = array<i64: 4, 1>, scalar_prefetch = 0 : i64, scratch_operands = 0 : i64, tpu.core_type = #tpu.core_type<tc>, window_params = [{transform_indices = @transform_0, window_bounds = array<i64: 8, 128>}, {pipeline_mode = #tpu.pipeline_mode<synchronous>, transform_indices = @transform_1, window_bounds = array<i64: 1, 128>}, {pipeline_mode = #tpu.pipeline_mode<synchronous>, transform_indices = @transform_2, window_bounds = array<i64: 1, 128>}, {transform_indices = @transform_3, window_bounds = array<i64: 128, 128>}, {transform_indices = @transform_4, window_bounds = array<i64: 1, 128>}, {transform_indices = @transform_5, window_bounds = array<i64: 8, 128>}]} {
    %c0 = arith.constant 0 : index
    %c0_0 = arith.constant 0 : index
    %0 = vector.load %arg2[%c0, %c0_0] : memref<8x128xf32, #tpu.memory_space<vmem>>, vector<8x128xf32>
    %cst = arith.constant dense<0.000000e+00> : vector<8xf32>
    %1 = vector.multi_reduction <add>, %0, %cst [1] : vector<8x128xf32> to vector<8xf32>
    %2 = vector.shape_cast %1 : vector<8xf32> to vector<8x1xf32>
    %cst_1 = arith.constant 1.280000e+02 : f32
    %3 = vector.broadcast %cst_1 : f32 to vector<8x1xf32>
    %4 = arith.divf %2, %3 : vector<8x1xf32>
    %5 = arith.mulf %0, %0 : vector<8x128xf32>
    %cst_2 = arith.constant dense<0.000000e+00> : vector<8xf32>
    %6 = vector.multi_reduction <add>, %5, %cst_2 [1] : vector<8x128xf32> to vector<8xf32>
    %7 = vector.shape_cast %6 : vector<8xf32> to vector<8x1xf32>
    %cst_3 = arith.constant 1.280000e+02 : f32
    %8 = vector.broadcast %cst_3 : f32 to vector<8x1xf32>
    %9 = arith.divf %7, %8 : vector<8x1xf32>
    %10 = arith.mulf %4, %4 : vector<8x1xf32>
    %11 = arith.subf %9, %10 : vector<8x1xf32>
    %cst_4 = arith.constant 0.000000e+00 : f32
    %12 = vector.broadcast %cst_4 : f32 to vector<8x1xf32>
    %13 = arith.maximumf %11, %12 : vector<8x1xf32>
    %cst_5 = arith.constant 9.99999974E-6 : f32
    %14 = vector.broadcast %cst_5 : f32 to vector<8x1xf32>
    %15 = arith.addf %13, %14 : vector<8x1xf32>
    %16 = math.rsqrt %15 : vector<8x1xf32>
    %17 = vector.broadcast %4 : vector<8x1xf32> to vector<8x128xf32>
    %18 = arith.subf %0, %17 : vector<8x128xf32>
    %19 = vector.broadcast %16 : vector<8x1xf32> to vector<8x128xf32>
    %20 = arith.mulf %18, %19 : vector<8x128xf32>
    %c0_6 = arith.constant 0 : index
    %c0_7 = arith.constant 0 : index
    %21 = vector.load %arg3[%c0_6, %c0_7] : memref<1x128xf32, #tpu.memory_space<vmem>>, vector<1x128xf32>
    %22 = vector.broadcast %21 : vector<1x128xf32> to vector<8x128xf32>
    %23 = arith.mulf %20, %22 : vector<8x128xf32>
    %c0_8 = arith.constant 0 : index
    %c0_9 = arith.constant 0 : index
    %24 = vector.load %arg4[%c0_8, %c0_9] : memref<1x128xf32, #tpu.memory_space<vmem>>, vector<1x128xf32>
    %25 = vector.broadcast %24 : vector<1x128xf32> to vector<8x128xf32>
    %26 = arith.addf %23, %25 : vector<8x128xf32>
    %c0_10 = arith.constant 0 : index
    %c0_11 = arith.constant 0 : index
    %27 = vector.load %arg5[%c0_10, %c0_11] : memref<128x128xf32, #tpu.memory_space<vmem>>, vector<128x128xf32>
    %cst_12 = arith.constant dense<0.000000e+00> : vector<8x128xf32>
    %28 = tpu.matmul %26, %27, %cst_12 {dimension_numbers = #tpu.dot_dimension_numbers<[1], [1], [0], [0], [0, 0, 1, 0], [], []>} : vector<8x128xf32>, vector<128x128xf32>, vector<8x128xf32> -> vector<8x128xf32>
    %c0_13 = arith.constant 0 : index
    %c0_14 = arith.constant 0 : index
    %29 = vector.load %arg6[%c0_13, %c0_14] : memref<1x128xf32, #tpu.memory_space<vmem>>, vector<1x128xf32>
    %30 = vector.broadcast %29 : vector<1x128xf32> to vector<8x128xf32>
    %31 = arith.addf %28, %30 : vector<8x128xf32>
    %c0_15 = arith.constant 0 : index
    %c0_16 = arith.constant 0 : index
    %32 = vector.load %arg7[%c0_15, %c0_16] : memref<8x128xf32, #tpu.memory_space<vmem>>, vector<8x128xf32>
    tpu.vector_store %arg7[%c0_15, %c0_16], %31 {strides = array<i32>} : memref<8x128xf32, #tpu.memory_space<vmem>>, vector<8x128xf32>,
    return
  }
  func.func @transform_0(%arg0: i32, %arg1: i32) -> (i32, i32) {
    %c0_i32 = arith.constant 0 : i32
    %c0_i32_0 = arith.constant 0 : i32
    return %arg0, %c0_i32 : i32, i32
  }
  func.func @transform_1(%arg0: i32, %arg1: i32) -> (i32, i32) {
    %c0_i32 = arith.constant 0 : i32
    %c0_i32_0 = arith.constant 0 : i32
    %c0_i32_1 = arith.constant 0 : i32
    return %c0_i32, %c0_i32_0 : i32, i32
  }
  func.func @transform_2(%arg0: i32, %arg1: i32) -> (i32, i32) {
    %c0_i32 = arith.constant 0 : i32
    %c0_i32_0 = arith.constant 0 : i32
    %c0_i32_1 = arith.constant 0 : i32
    return %c0_i32, %c0_i32_0 : i32, i32
  }
  func.func @transform_3(%arg0: i32, %arg1: i32) -> (i32, i32) {
    %c0_i32 = arith.constant 0 : i32
    %c0_i32_0 = arith.constant 0 : i32
    return %arg1, %c0_i32 : i32, i32
  }
  func.func @transform_4(%arg0: i32, %arg1: i32) -> (i32, i32) {
    %c0_i32 = arith.constant 0 : i32
    %c0_i32_0 = arith.constant 0 : i32
    return %c0_i32, %arg1 : i32, i32
  }
  func.func @transform_5(%arg0: i32, %arg1: i32) -> (i32, i32) {
    %c0_i32 = arith.constant 0 : i32
    return %arg0, %arg1 : i32, i32
  }
}

</mosaic_0001>

<llo_original>
// kernel: tpu_custom_call.1
$region0: #{tpu_custom_call.1}
  #allocation0 [shape = 'u32[]', space=smem, size = 0x4, offset = 0x4, fixed_abs, tag = 'smem constant byte address 0x4 - core index']
  #allocation1 [shape = 'u32[144,128]{1,0:T(1,128)}', space=vmem, size = 0x12000, scoped, tag = 'internal scratch']
  %s0 = inlined_call_operand.hbm [shape: f32[32,128], index: 0, kind: input, shape index: {}]
  %s1 = inlined_call_operand.vmem [shape: f32[1,128], index: 1, kind: input, shape index: {}]
  %s2 = inlined_call_operand.vmem [shape: f32[1,128], index: 2, kind: input, shape index: {}]
  %s3 = inlined_call_operand.hbm [shape: f32[128,128], index: 3, kind: input, shape index: {}]
  %s4 = inlined_call_operand.vmem [shape: f32[1,128], index: 4, kind: input, shape index: {}]
  %s5 = inlined_call_operand.hbm [shape: f32[32,128], index: 5, kind: output, shape index: {}]
  %s6 = sld [smem:[#allocation0]]
  $region61: #{tpu_custom_call.1} parent=0
    _
  %s8 = ssub.s32 1, %s6
  %s9 = scalar_select 0, %s8, %s6
  $region1: #{tpu_custom_call.1} parent=0
    #allocation2 [shape = 'u8[8192]{0}', space=vmem, size = 0x2000, scoped, tag = 'input window, operand 0']
    #allocation3 [shape = 's32[2]{0}', space=sflag, size = 0x8, scoped, tag = 'scoped memory for tpu_custom_call.1']
    #allocation4 [shape = 's32[2]{0}', space=sflag, size = 0x8, scoped, tag = 'scoped memory for tpu_custom_call.1']
    #allocation5 [shape = 'u8[65536]{0}', space=vmem, size = 0x10000, scoped, tag = 'input window, operand 3, single buffered']
    #allocation6 [shape = 's32[1]{0}', space=sflag, size = 0x4, scoped, tag = 'scoped memory for tpu_custom_call.1']
    #allocation7 [shape = 'u8[8192]{0}', space=vmem, size = 0x2000, scoped, tag = 'output window, operand 0']
    %10 = vsyncpa [#allocation3], 0
    %s11 = scalar_lea.sflag [#allocation3], 1
    %12 = vsyncpa %s11, 0
    %13 = vsyncpa [#allocation6], 0
    %14 = vsyncpa [#allocation4], 0
    %s15 = scalar_lea.sflag [#allocation4], 1
    %16 = vsyncpa %s15, 0
    loop: start=0, step=1, limit=6
    $region2: #{tpu_custom_call.1} parent=1 // loop_pre_header
      _
    $region3: #{tpu_custom_call.1} parent=1 // loop_header
      %s18 = sphi 0, %s22
      %p19 = scmp.ge.s32.totalorder %s18, 6
      %s25 = sphi 0, %s37
      %s26 = sphi 0, %s33
      %s27 = sphi 0, %s25
      %s28 = sphi 0, %s26
      %s29 = sphi 0, %s27
      %s30 = sphi 0, %s28
      %s40 = sphi 0, %s42
      %s43 = sphi 0, %s40
      %s44 = sphi 0, %s43
      %s60 = sphi 0, %s44
      %s64 = sphi 0, %s64
      %s66 = sphi 0, %s64
      %s67 = sphi 0, %s66
      %s81 = sphi 0, %s67
      %s85 = sphi 0, %s85
      %s87 = sphi 0, %s85
      %s88 = sphi 0, %s87
      %s102 = sphi 0, %s88
      %s108 = sphi 0, %s110
      %s111 = sphi 0, %s108
      %s112 = sphi 0, %s111
      %s128 = sphi 0, %s112
      %s134 = sphi 0, %s136
      %s137 = sphi 0, %s134
      %s138 = sphi 0, %s137
      %s154 = sphi 0, %s138
      %s162 = sphi 0, %s164
      %s165 = sphi 0, %s162
      %s166 = sphi 0, %s165
      %s182 = sphi 0, %s166
    $region4: #{tpu_custom_call.1} parent=1 // loop_header_branch
      %21 = sbr.rel (%p19) target = $region8
    $region5: #{tpu_custom_call.1} parent=1 // loop_body
      %s23 = ssub.s32 %s18, 1
      %s24 = ssub.s32 %s18, 2
      %s31 = sadd.s32 1, %s26
      %p32 = scmp.ge.s32.totalorder %s31, 1
      %s33 = scalar_select %p32, 0, %s31
      %s34 = sadd.s32 1, %s25
      %s35 = scalar_select %p32, %s34, %s25
      %p36 = scmp.ge.s32.totalorder %s35, 4
      %s37 = scalar_select %p36, 0, %s35
      %s38 = ssub.s32 %s25, %s37
      %p39 = scmp.eq.s32.totalorder %s38, 0
      %s41 = sadd.s32 %s40, 1
      %s42 = scalar_select %p39, %s40, %s41
      %p45 = pneg %p39
      %p46 = scmp.eq.s32.totalorder %s18, 3
      %p47 = por %p45, %p46
      %p48 = scmp.ne.s32.totalorder %s40, %s43
      %p49 = scmp.eq.s32.totalorder %s18, 0
      %p50 = por %p48, %p49
      %p51 = scmp.ne.s32.totalorder %s40, %s43
      %p52 = scmp.eq.s32.totalorder %s23, 3
      %p53 = por %p51, %p52
      %p54 = scmp.ne.s32.totalorder %s43, %s44
      %p55 = scmp.eq.s32.totalorder %s23, 0
      %p56 = por %p54, %p55
      %p57 = scmp.ne.s32.totalorder %s43, %s44
      %p58 = scmp.eq.s32.totalorder %s24, 3
      %p59 = por %p57, %p58
      %p61 = scmp.ne.s32.totalorder %s44, %s60
      %p62 = scmp.eq.s32.totalorder %s24, 0
      %p63 = por %p61, %p62
      %s65 = sadd.s32 %s64, 1
      %p68 = scmp.eq.s32.totalorder %s18, 3
      %p69 = scmp.ne.s32.totalorder %s64, %s66
      %p70 = scmp.eq.s32.totalorder %s18, 0
      %p71 = por %p69, %p70
      %p72 = scmp.ne.s32.totalorder %s64, %s66
      %p73 = scmp.eq.s32.totalorder %s23, 3
      %p74 = por %p72, %p73
      %p75 = scmp.ne.s32.totalorder %s66, %s67
      %p76 = scmp.eq.s32.totalorder %s23, 0
      %p77 = por %p75, %p76
      %p78 = scmp.ne.s32.totalorder %s66, %s67
      %p79 = scmp.eq.s32.totalorder %s24, 3
      %p80 = por %p78, %p79
      %p82 = scmp.ne.s32.totalorder %s67, %s81
      %p83 = scmp.eq.s32.totalorder %s24, 0
      %p84 = por %p82, %p83
      %s86 = sadd.s32 %s85, 1
      %p89 = scmp.eq.s32.totalorder %s18, 3
      %p90 = scmp.ne.s32.totalorder %s85, %s87
      %p91 = scmp.eq.s32.totalorder %s18, 0
      %p92 = por %p90, %p91
      %p93 = scmp.ne.s32.totalorder %s85, %s87
      %p94 = scmp.eq.s32.totalorder %s23, 3
      %p95 = por %p93, %p94
      %p96 = scmp.ne.s32.totalorder %s87, %s88
      %p97 = scmp.eq.s32.totalorder %s23, 0
      %p98 = por %p96, %p97
      %p99 = scmp.ne.s32.totalorder %s87, %s88
      %p100 = scmp.eq.s32.totalorder %s24, 3
      %p101 = por %p99, %p100
      %p103 = scmp.ne.s32.totalorder %s88, %s102
      %p104 = scmp.eq.s32.totalorder %s24, 0
      %p105 = por %p103, %p104
      %s106 = ssub.s32 %s26, %s33
      %p107 = scmp.eq.s32.totalorder %s106, 0
      %s109 = sadd.s32 %s108, 1
      %s110 = scalar_select %p107, %s108, %s109
      %p113 = pneg %p107
      %p114 = scmp.eq.s32.totalorder %s18, 3
      %p115 = por %p113, %p114
      %p116 = scmp.ne.s32.totalorder %s108, %s111
      %p117 = scmp.eq.s32.totalorder %s18, 0
      %p118 = por %p116, %p117
      %p119 = scmp.ne.s32.totalorder %s108, %s111
      %p120 = scmp.eq.s32.totalorder %s23, 3
      %p121 = por %p119, %p120
      %p122 = scmp.ne.s32.totalorder %s111, %s112
      %p123 = scmp.eq.s32.totalorder %s23, 0
      %p124 = por %p122, %p123
      %p125 = scmp.ne.s32.totalorder %s111, %s112
      %p126 = scmp.eq.s32.totalorder %s24, 3
      %p127 = por %p125, %p126
      %p129 = scmp.ne.s32.totalorder %s112, %s128
      %p130 = scmp.eq.s32.totalorder %s24, 0
      %p131 = por %p129, %p130
      %s132 = ssub.s32 %s26, %s33
      %p133 = scmp.eq.s32.totalorder %s132, 0
      %s135 = sadd.s32 %s134, 1
      %s136 = scalar_select %p133, %s134, %s135
      %p139 = pneg %p133
      %p140 = scmp.eq.s32.totalorder %s18, 3
      %p141 = por %p139, %p140
      %p142 = scmp.ne.s32.totalorder %s134, %s137
      %p143 = scmp.eq.s32.totalorder %s18, 0
      %p144 = por %p142, %p143
      %p145 = scmp.ne.s32.totalorder %s134, %s137
      %p146 = scmp.eq.s32.totalorder %s23, 3
      %p147 = por %p145, %p146
      %p148 = scmp.ne.s32.totalorder %s137, %s138
      %p149 = scmp.eq.s32.totalorder %s23, 0
      %p150 = por %p148, %p149
      %p151 = scmp.ne.s32.totalorder %s137, %s138
      %p152 = scmp.eq.s32.totalorder %s24, 3
      %p153 = por %p151, %p152
      %p155 = scmp.ne.s32.totalorder %s138, %s154
      %p156 = scmp.eq.s32.totalorder %s24, 0
      %p157 = por %p155, %p156
      %s158 = ssub.s32 %s25, %s37
      %s159 = ssub.s32 %s26, %s33
      %s160 = sor.u32 %s158, %s159
      %p161 = scmp.eq.s32.totalorder %s160, 0
      %s163 = sadd.s32 %s162, 1
      %s164 = scalar_select %p161, %s162, %s163
      %p167 = pneg %p161
      %p168 = scmp.eq.s32.totalorder %s18, 3
      %p169 = por %p167, %p168
      %p170 = scmp.ne.s32.totalorder %s162, %s165
      %p171 = scmp.eq.s32.totalorder %s18, 0
      %p172 = por %p170, %p171
      %p173 = scmp.ne.s32.totalorder %s162, %s165
      %p174 = scmp.eq.s32.totalorder %s23, 3
      %p175 = por %p173, %p174
      %p176 = scmp.ne.s32.totalorder %s165, %s166
      %p177 = scmp.eq.s32.totalorder %s23, 0
      %p178 = por %p176, %p177
      %p179 = scmp.ne.s32.totalorder %s165, %s166
      %p180 = scmp.eq.s32.totalorder %s24, 3
      %p181 = por %p179, %p180
      %p183 = scmp.ne.s32.totalorder %s166, %s182
      %p184 = scmp.eq.s32.totalorder %s24, 0
      %p185 = por %p183, %p184
      %p186 = scmp.le.s32.totalorder 1, %s18
      %p187 = scmp.lt.s32.totalorder %s18, 5
      %p188 = pnand %p186, %p187
      %p189 = pneg %p188
      // Predicated region
      $region9: #{tpu_custom_call.1} parent=5 // pred_check
        _
      $region10: #{tpu_custom_call.1} parent=5 // pred_check_branch
        %191 = sbr.rel (%p188) target = $region12
      $region11: #{tpu_custom_call.1} parent=5 // pred_region
        %s192 = ssub.s32 %s18, 1
        // Predicated region
        $region13: #{tpu_custom_call.1} parent=11 // pred_check
          %p193 = pneg %p77
        $region14: #{tpu_custom_call.1} parent=11 // pred_check_branch
          %195 = sbr.rel (%p193) target = $region16
        $region15: #{tpu_custom_call.1} parent=11 // pred_region
          _
        $region16: #{tpu_custom_call.1} parent=11 // pred_fallthru
          _
        // Predicated region
        $region17: #{tpu_custom_call.1} parent=11 // pred_check
          %p196 = pneg %p98
        $region18: #{tpu_custom_call.1} parent=11 // pred_check_branch
          %198 = sbr.rel (%p196) target = $region20
        $region19: #{tpu_custom_call.1} parent=11 // pred_region
          _
        $region20: #{tpu_custom_call.1} parent=11 // pred_fallthru
          _
        // Predicated region
        $region21: #{tpu_custom_call.1} parent=11 // pred_check
          %p199 = pneg %p124
        $region22: #{tpu_custom_call.1} parent=11 // pred_check_branch
          %201 = sbr.rel (%p199) target = $region24
        $region23: #{tpu_custom_call.1} parent=11 // pred_region
          %s202 = smul.u32 16, %s28
          %s204 = ssub.s32 2048, 2048
          %205 = vsyncadd [#allocation6], %s204
          %s206 = smul.addr %s202, 128
          %s207 = scalar_lea.hbm %s3, %s206
          %s208 = sshll.u32 [#allocation5], 4
          %s209 = int_to_ptr.vmem [resolvable:$true] %s208
          %214 = dma.hbm_to_vmem [thread:$0]  %s207, 2048, %s209, [#allocation6], 128, 128, 8
        $region24: #{tpu_custom_call.1} parent=11 // pred_fallthru
          _
        // Predicated region
        $region25: #{tpu_custom_call.1} parent=11 // pred_check
          %p215 = pneg %p150
        $region26: #{tpu_custom_call.1} parent=11 // pred_check_branch
          %217 = sbr.rel (%p215) target = $region28
        $region27: #{tpu_custom_call.1} parent=11 // pred_region
          %p218 = scmp.lt.s32.totalorder %s28, 0
          %s219 = scalar_select %p218, %s28, 0
          %s220 = scalar_lea.vmem %s4, %s219
        $region28: #{tpu_custom_call.1} parent=11 // pred_fallthru
          _
      $region12: #{tpu_custom_call.1} parent=5 // pred_fallthru
        _
      %p221 = scmp.lt.s32.totalorder %s18, 4
      // Predicated region
      $region29: #{tpu_custom_call.1} parent=5 // pred_check
        %p222 = pneg %p221
      $region30: #{tpu_custom_call.1} parent=5 // pred_check_branch
        %224 = sbr.rel (%p222) target = $region32
      $region31: #{tpu_custom_call.1} parent=5 // pred_region
        // Predicated region
        $region33: #{tpu_custom_call.1} parent=31 // pred_check
          %p225 = pneg %p50
        $region34: #{tpu_custom_call.1} parent=31 // pred_check_branch
          %227 = sbr.rel (%p225) target = $region36
        $region35: #{tpu_custom_call.1} parent=31 // pred_region
          %s228 = sand.u32 %s40, 1
          %s229 = scalar_lea.sflag [#allocation3], %s228
          %s230 = sand.u32 %s40, 1
          %s231 = smul.addr %s230, 8
          %s232 = scalar_lea.vmem [#allocation2], %s231
          %s234 = ssub.s32 128, 128
          %235 = vsyncadd %s229, %s234
          %s236 = smul.addr %s25, 128
          %s237 = scalar_lea.hbm %s0, %s236
          %s239 = sshll.u32 %s232, 4
          %s240 = int_to_ptr.vmem [resolvable:$true] %s239
          %242 = dma.hbm_to_vmem [thread:$0]  %s237, 128, %s240, %s229
        $region36: #{tpu_custom_call.1} parent=31 // pred_fallthru
          _
      $region32: #{tpu_custom_call.1} parent=5 // pred_fallthru
        _
      %p243 = scmp.le.s32.totalorder 1, %s18
      %p244 = scmp.lt.s32.totalorder %s18, 5
      %p245 = pnand %p243, %p244
      %p246 = pneg %p245
      // Predicated region
      $region37: #{tpu_custom_call.1} parent=5 // pred_check
        _
      $region38: #{tpu_custom_call.1} parent=5 // pred_check_branch
        %248 = sbr.rel (%p245) target = $region40
      $region39: #{tpu_custom_call.1} parent=5 // pred_region
        %s249 = ssub.s32 %s18, 1
        %s250 = sand.u32 %s43, 1
        %s251 = scalar_lea.sflag [#allocation3], %s250
        %s252 = sand.u32 %s43, 1
        %s253 = smul.addr %s252, 8
        %s254 = scalar_lea.vmem [#allocation2], %s253
        // Predicated region
        $region41: #{tpu_custom_call.1} parent=39 // pred_check
          %p255 = pneg %p56
        $region42: #{tpu_custom_call.1} parent=39 // pred_check_branch
          %257 = sbr.rel (%p255) target = $region44
        $region43: #{tpu_custom_call.1} parent=39 // pred_region
          %258 = dma.done %s251, 128
        $region44: #{tpu_custom_call.1} parent=39 // pred_fallthru
          _
        // Predicated region
        $region45: #{tpu_custom_call.1} parent=39 // pred_check
          %p259 = pneg %p124
        $region46: #{tpu_custom_call.1} parent=39 // pred_check_branch
          %261 = sbr.rel (%p259) target = $region48
        $region47: #{tpu_custom_call.1} parent=39 // pred_region
          %262 = dma.done [#allocation6], 2048
        $region48: #{tpu_custom_call.1} parent=39 // pred_fallthru
          _
        %s263 = sand.u32 %s43, 1
        %s264 = scalar_lea.sflag [#allocation3], %s263
        %s265 = sand.u32 %s43, 1
        %s266 = smul.addr %s265, 8
        %s267 = scalar_lea.vmem [#allocation2], %s266
        %p268 = pneg %p56
        %p269 = pneg %p53
        %p270 = pneg %p77
        %p271 = pneg %p74
        %p272 = pneg %p98
        %p273 = pneg %p95
        %p274 = pneg %p124
        %p275 = pneg %p121
        %p276 = scmp.lt.s32.totalorder %s28, 0
        %s277 = scalar_select %p276, %s28, 0
        %s278 = scalar_lea.vmem %s4, %s277
        %p279 = pneg %p150
        %p280 = pneg %p147
        %p281 = pneg %p178
        %p282 = pneg %p175
        %s283 = sand.u32 %s165, 1
        %s284 = scalar_lea.sflag [#allocation4], %s283
        %s285 = sand.u32 %s165, 1
        %s286 = smul.addr %s285, 8
        %s287 = scalar_lea.vmem [#allocation7], %s286
        %s288 = smul.u32 16, %s28
        %p289 = scmp.lt.s32.totalorder %s28, 0
        %s290 = scalar_select %p289, %s28, 0
        %s291 = scalar_lea.vmem %s4, %s290
        %v292 = vld [vmem:[%s254] sm:$0xff]
        %293 = vadd.xlane.f32.xlu0 %v292
        %v294 = vpop.xlane.xlu0 %293
        %v295 = vrcp.pop 128.0
        %v296 = vmul.f32 %v294, %v295
        %v297 = vmul.f32 %v292, %v292
        %298 = vadd.xlane.f32.xlu0 %v297
        %v299 = vpop.xlane.xlu0 %298
        %v300 = vmul.f32 %v299, %v295
        %v301 = vmul.f32 %v296, %v296
        %v302 = vsub.f32 %v300, %v301
        %v303 = vmax.f32 %v302, 0.0
        %v304 = vadd.f32 %v303, 1e-05
        %v305 = vrsqrt.pop %v304
        %v306 = vsub.f32 %v292, %v296
        %v307 = vmul.f32 %v306, %v305
        %v308 = vld [vmem:[%s1] sm:$0x1]
        %v310 = vlaneseq
        %v311 = vshrl.u32 %v310, 7
        %v312 = vsub.s32 0, %v311
        %v313 = vrot.slane %v308, %v312
        %v315 = vmul.f32 %v307, %v313
        %v316 = vld [vmem:[%s2] sm:$0x1]
        %v318 = vlaneseq
        %v319 = vshrl.u32 %v318, 7
        %v320 = vsub.s32 0, %v319
        %v321 = vrot.slane %v316, %v320
        %v323 = vadd.f32 %v315, %v321
        %v324 = vld [vmem:[#allocation5] sm:$0xff]
        %v325 = vld [vmem:[#allocation5 + $0x8] sm:$0xff]
        %v326 = vld [vmem:[#allocation5 + $0x10] sm:$0xff]
        %v327 = vld [vmem:[#allocation5 + $0x18] sm:$0xff]
        %v328 = vld [vmem:[#allocation5 + $0x20] sm:$0xff]
        %v329 = vld [vmem:[#allocation5 + $0x28] sm:$0xff]
        %v330 = vld [vmem:[#allocation5 + $0x30] sm:$0xff]
        %v331 = vld [vmem:[#allocation5 + $0x38] sm:$0xff]
        %v332 = vld [vmem:[#allocation5 + $0x40] sm:$0xff]
        %v333 = vld [vmem:[#allocation5 + $0x48] sm:$0xff]
        %v334 = vld [vmem:[#allocation5 + $0x50] sm:$0xff]
        %v335 = vld [vmem:[#allocation5 + $0x58] sm:$0xff]
        %v336 = vld [vmem:[#allocation5 + $0x60] sm:$0xff]
        %v337 = vld [vmem:[#allocation5 + $0x68] sm:$0xff]
        %v338 = vld [vmem:[#allocation5 + $0x70] sm:$0xff]
        %v339 = vld [vmem:[#allocation5 + $0x78] sm:$0xff]
        %v340 = vld [vmem:[%s291] sm:$0x1]
        %v342 = vlaneseq
        %v343 = vshrl.u32 %v342, 7
        %v344 = vsub.s32 0, %v343
        %v345 = vrot.slane %v340, %v344
        %347 = vmatprep.subr.mxu0 0.0
        %348 = vmatpush1.xpose.msra.mxu0 %v339
        %349 = vmatprep.subr.mxu0 0.0
        %350 = vmatpush1.xpose.msra.mxu0 %v338
        %351 = vmatprep.subr.mxu0 0.0
        %352 = vmatpush1.xpose.msra.mxu0 %v337
        %353 = vmatprep.subr.mxu0 0.0
        %354 = vmatpush1.xpose.msra.mxu0 %v336
        %355 = vmatprep.subr.mxu0 0.0
        %356 = vmatpush1.xpose.msra.mxu0 %v335
        %357 = vmatprep.subr.mxu0 0.0
        %358 = vmatpush1.xpose.msra.mxu0 %v334
        %359 = vmatprep.subr.mxu0 0.0
        %360 = vmatpush1.xpose.msra.mxu0 %v333
        %361 = vmatprep.subr.mxu0 0.0
        %362 = vmatpush1.xpose.msra.mxu0 %v332
        %363 = vmatprep.subr.mxu0 0.0
        %364 = vmatpush1.xpose.msra.mxu0 %v331
        %365 = vmatprep.subr.mxu0 0.0
        %366 = vmatpush1.xpose.msra.mxu0 %v330
        %367 = vmatprep.subr.mxu0 0.0
        %368 = vmatpush1.xpose.msra.mxu0 %v329
        %369 = vmatprep.subr.mxu0 0.0
        %370 = vmatpush1.xpose.msra.mxu0 %v328
        %371 = vmatprep.subr.mxu0 0.0
        %372 = vmatpush1.xpose.msra.mxu0 %v327
        %373 = vmatprep.subr.mxu0 0.0
        %374 = vmatpush1.xpose.msra.mxu0 %v326
        %375 = vmatprep.subr.mxu0 0.0
        %376 = vmatpush1.xpose.msra.mxu0 %v325
        %377 = vmatprep.subr.mxu0 0.0
        %378 = vmatpush1.xpose.msra.mxu0 %v324
        %379 = vmatprep.subr.mxu0 0.0
        %380 = vmatpush2.xpose.msra.mxu0 0.0
        %381 = vmatprep.subr.mxu0 0.0
        %382 = vmatpush2.xpose.msra.mxu0 0.0
        %383 = vmatprep.subr.mxu0 0.0
        %384 = vmatpush2.xpose.msra.mxu0 0.0
        %385 = vmatprep.subr.mxu0 0.0
        %386 = vmatpush2.xpose.msra.mxu0 0.0
        %387 = vmatprep.subr.mxu0 0.0
        %388 = vmatpush2.xpose.msra.mxu0 0.0
        %389 = vmatprep.subr.mxu0 0.0
        %390 = vmatpush2.xpose.msra.mxu0 0.0
        %391 = vmatprep.subr.mxu0 0.0
        %392 = vmatpush2.xpose.msra.mxu0 0.0
        %393 = vmatprep.subr.mxu0 0.0
        %394 = vmatpush2.xpose.msra.mxu0 0.0
        %395 = vmatprep.subr.mxu0 0.0
        %396 = vmatpush2.xpose.msra.mxu0 0.0
        %397 = vmatprep.subr.mxu0 0.0
        %398 = vmatpush2.xpose.msra.mxu0 0.0
        %399 = vmatprep.subr.mxu0 0.0
        %400 = vmatpush2.xpose.msra.mxu0 0.0
        %401 = vmatprep.subr.mxu0 0.0
        %402 = vmatpush2.xpose.msra.mxu0 0.0
        %403 = vmatprep.subr.mxu0 0.0
        %404 = vmatpush2.xpose.msra.mxu0 0.0
        %405 = vmatprep.subr.mxu0 0.0
        %406 = vmatpush2.xpose.msra.mxu0 0.0
        %407 = vmatprep.subr.mxu0 0.0
        %408 = vmatpush2.xpose.msra.mxu0 0.0
        %409 = vmatprep.subr.mxu0 0.0
        %410 = vmatpush2.xpose.msra.mxu0 0.0
        %411 = vmatprep.mubr.f32.mxu0 0.0
        %412 = vmatmul.mubr.f32.gmra.mxu0 %v323
        %v413 = vpop.f32.mrf.mxu0
        %v414 = vadd.f32 %v345, %v413
        %v415 = vpop.f32.mrf.mxu0
        %416 = vdwg.mxu0
        %417 = vst [vmem:[%s287] sm:$0xff] %v414
        %s418 = sand.u32 %s165, 1
        %s419 = scalar_lea.sflag [#allocation4], %s418
        %s420 = sand.u32 %s165, 1
        %s421 = smul.addr %s420, 8
        %s422 = scalar_lea.vmem [#allocation7], %s421
        // Predicated region
        $region49: #{tpu_custom_call.1} parent=39 // pred_check
          %p423 = pneg %p175
        $region50: #{tpu_custom_call.1} parent=39 // pred_check_branch
          %425 = sbr.rel (%p423) target = $region52
        $region51: #{tpu_custom_call.1} parent=39 // pred_region
          %s427 = ssub.s32 128, 128
          %428 = vsyncadd %s419, %s427
          %s429 = sadd.s32 %s28, %s27
          %s430 = smul.addr %s429, 128
          %s431 = scalar_lea.hbm %s5, %s430
          %s433 = sshll.u32 %s422, 4
          %s434 = int_to_ptr.vmem [resolvable:$true] %s433
          %436 = dma.vmem_to_hbm [thread:$0]  %s434, 128, %s431, %s419
        $region52: #{tpu_custom_call.1} parent=39 // pred_fallthru
          _
      $region40: #{tpu_custom_call.1} parent=5 // pred_fallthru
        _
      %p437 = scmp.le.s32.totalorder 2, %s18
      // Predicated region
      $region53: #{tpu_custom_call.1} parent=5 // pred_check
        %p438 = pneg %p437
      $region54: #{tpu_custom_call.1} parent=5 // pred_check_branch
        %440 = sbr.rel (%p438) target = $region56
      $region55: #{tpu_custom_call.1} parent=5 // pred_region
        %s441 = ssub.s32 %s18, 2
        // Predicated region
        $region57: #{tpu_custom_call.1} parent=55 // pred_check
          %p442 = pneg %p181
        $region58: #{tpu_custom_call.1} parent=55 // pred_check_branch
          %444 = sbr.rel (%p442) target = $region60
        $region59: #{tpu_custom_call.1} parent=55 // pred_region
          %s445 = sand.u32 %s166, 1
          %s446 = scalar_lea.sflag [#allocation4], %s445
          %s447 = sand.u32 %s166, 1
          %s448 = smul.addr %s447, 8
          %s449 = scalar_lea.vmem [#allocation7], %s448
          %450 = dma.done %s446, 128
        $region60: #{tpu_custom_call.1} parent=55 // pred_fallthru
          _
      $region56: #{tpu_custom_call.1} parent=5 // pred_fallthru
        _
    $region6: #{tpu_custom_call.1} parent=1 // loop_footer
      %s22 = sadd.s32 1, %s18
    $region7: #{tpu_custom_call.1} parent=1 // loop_footer_branch
      %17 = sbr.rel target = $region3
    $region8: #{tpu_custom_call.1} parent=1 // loop_exit
      _
    %451 = vsyncpa [#allocation3], 1
    %s452 = scalar_lea.sflag [#allocation3], 1
    %453 = vsyncpa %s452, 1
    %454 = vsyncpa [#allocation6], 1
    %455 = vsyncpa [#allocation4], 1
    %s456 = scalar_lea.sflag [#allocation4], 1
    %457 = vsyncpa %s456, 1

</llo_original>
